<compile_context>
chip_gen: v7x
topology: tpu7x:2x2x1
jax: 0.10.0
libtpu: 0.0.40
codegen_flags: <defaults>
</compile_context>

<pallas_src>
import jax
import jax.numpy as jnp
from jax.experimental import pallas as pl
from jax.experimental.pallas import tpu as pltpu


def _round_up(x, m):
    return ((x + m - 1) // m) * m


def pw_kernel_single_k(x_ref, bias_ref, w_ref, o_ref):
    # x_ref:    (tm, K)   batch-row tile, full (padded) feature dim
    # bias_ref: (1,  K)   whitening bias (broadcast over rows)
    # w_ref:    (K, tn)   pre-transposed linear weight tile
    # o_ref:    (tm, tn)  output tile
    xc = x_ref[...] - bias_ref[...]                         # VPU
    o_ref[...] = jnp.dot(
        xc, w_ref[...], preferred_element_type=jnp.float32  # MXU, f32 acc
    ).astype(o_ref.dtype)


def pw_kernel_multi_k(x_ref, bias_ref, w_ref, o_ref, acc_ref):
    # x_ref:    (tm, tk)  batch-row x input-feature tile
    # bias_ref: (1,  tk)  whitening bias tile (broadcast over rows)
    # w_ref:    (tk, tn)  pre-transposed linear weight tile
    # o_ref:    (tm, tn)  output tile (written on the last K step)
    # acc_ref:  (tm, tn)  f32 accumulator scratch, persists across K steps
    @pl.when(pl.program_id(2) == 0)
    def _():
        acc_ref[...] = jnp.zeros_like(acc_ref)

    xc = x_ref[...] - bias_ref[...]                          # VPU, hides under MXU
    acc_ref[...] += jnp.dot(xc, w_ref[...],
                            preferred_element_type=jnp.float32)

    @pl.when(pl.program_id(2) == pl.num_programs(2) - 1)
    def _():
        o_ref[...] = acc_ref[...].astype(o_ref.dtype)


def pw_layer(x, bias, weight_t, *, compute_dtype=None,
             tm_max=256, tn_max=256, tk_max=1024):
    """Parametric whitening: y = (x - bias) @ weight_t.

    x:        (B, K)  activations
    bias:     (K,)    whitening bias
    weight_t: (K, N)  nn.Linear weight pre-transposed ONCE at parameter-prep
                      time (keeps the transpose out of the hot path)
    compute_dtype: optional MXU operand dtype (e.g. jnp.bfloat16); accumulation
                   is always f32.  None -> keep x.dtype.
    """
    B, K = x.shape
    K2, N = weight_t.shape
    assert K == K2, "weight_t must be (input_size, output_size)"

    out_dtype = x.dtype
    if compute_dtype is not None:
        x = x.astype(compute_dtype)
        bias = bias.astype(compute_dtype)
        weight_t = weight_t.astype(compute_dtype)

    # Tile sizes: as large as practical, aligned to MXU / vreg granularity
    # (last dim multiple of 128 -> lane-dense, unmasked vector stores).
    tm = min(tm_max, _round_up(B, 8))
    tk = min(tk_max, _round_up(K, 128))
    tn = min(tn_max, _round_up(N, 128))

    Bp, Kp, Np = _round_up(B, tm), _round_up(K, tk), _round_up(N, tn)

    # Zero-pad: padded K columns contribute (0 - 0) @ 0 = 0; padded B rows and
    # N columns are sliced off after the call.
    if (Bp, Kp) != (B, K):
        x = jnp.pad(x, ((0, Bp - B), (0, Kp - K)))
    if Kp != K:
        bias = jnp.pad(bias, (0, Kp - K))
    if (Kp, Np) != (K, N):
        weight_t = jnp.pad(weight_t, ((0, Kp - K), (0, Np - N)))

    bias2d = bias.reshape(1, Kp)

    # Scoped-VMEM budget: double-buffered inputs + output, plus accumulator.
    isz = jnp.dtype(x.dtype).itemsize
    vmem_need = (2 * (tm * tk + tk * tn + tk) * isz
                 + 2 * tm * tn * jnp.dtype(out_dtype).itemsize
                 + tm * tn * 4)
    vmem_limit = int(min(max(2 * vmem_need, 32 << 20), 48 << 20))

    single_k = (Kp == tk)

    if single_k:
        # 2-D grid, no accumulator: write each output tile directly.
        grid = (Bp // tm, Np // tn)
        out = pl.pallas_call(
            pw_kernel_single_k,
            out_shape=jax.ShapeDtypeStruct((Bp, Np), out_dtype),
            grid_spec=pltpu.PrefetchScalarGridSpec(
                num_scalar_prefetch=0,
                grid=grid,
                in_specs=[
                    pl.BlockSpec((tm, tk), lambda i, j: (i, 0)),   # x tile
                    pl.BlockSpec((1, tk), lambda i, j: (0, 0)),    # bias
                    pl.BlockSpec((tk, tn), lambda i, j: (0, j)),   # weight tile
                ],
                out_specs=pl.BlockSpec((tm, tn), lambda i, j: (i, j)),
            ),
            compiler_params=pltpu.CompilerParams(
                dimension_semantics=("parallel", "parallel"),
                vmem_limit_bytes=vmem_limit,
            ),
        )(x, bias2d, weight_t)
    else:
        # 3-D grid with K reduction streamed through an f32 accumulator.
        grid = (Bp // tm, Np // tn, Kp // tk)
        out = pl.pallas_call(
            pw_kernel_multi_k,
            out_shape=jax.ShapeDtypeStruct((Bp, Np), out_dtype),
            grid_spec=pltpu.PrefetchScalarGridSpec(
                num_scalar_prefetch=0,
                grid=grid,
                in_specs=[
                    pl.BlockSpec((tm, tk), lambda i, j, k: (i, k)),   # x tile
                    pl.BlockSpec((1, tk), lambda i, j, k: (0, k)),    # bias tile
                    pl.BlockSpec((tk, tn), lambda i, j, k: (k, j)),   # weight tile
                ],
                out_specs=pl.BlockSpec((tm, tn), lambda i, j, k: (i, j)),
                scratch_shapes=[pltpu.VMEM((tm, tn), jnp.float32)],
            ),
            compiler_params=pltpu.CompilerParams(
                dimension_semantics=("parallel", "parallel", "arbitrary"),
                vmem_limit_bytes=vmem_limit,
            ),
        )(x, bias2d, weight_t)

    if (Bp, Np) != (B, N):
        out = out[:B, :N]
    return out


if __name__ == "__main__":
    # --- Test 1: small shapes consistent with the module's forward signature.
    input_size = 32
    output_size = 64
    batch = 8

    key = jax.random.PRNGKey(0)
    kx, kw, kx2, kw2, kb2 = jax.random.split(key, 5)

    # Deterministic parameter init mirroring PWLayer.__init__:
    #   bias = zeros(input_size); lin.weight ~ N(0, 0.02), shape (out, in)
    bias = jnp.zeros((input_size,), dtype=jnp.float32)
    weight = 0.02 * jax.random.normal(kw, (output_size, input_size),
                                      dtype=jnp.float32)
    # Hoisted out of the hot path: store the weight pre-transposed (K, N) once.
    weight_t = jnp.asarray(weight.T)

    x = jax.random.normal(kx, (batch, input_size), dtype=jnp.float32)

    # NOTE: for shapes this tiny a production dispatcher would fall back to
    # plain XLA; the Pallas path is exercised here for validation.
    # TODO(synk): dropout has p=0.0 (identity at inference); stochastic
    # training dropout would need pltpu.prng_seed/prng_random_bits in-kernel.
    y = pw_layer(x, bias, weight_t)
    y = jax.block_until_ready(y)

    y_ref = jnp.dot(x - bias[None, :], weight.T)
    assert y.shape == (batch, output_size)
    assert jnp.allclose(y, y_ref, atol=1e-5, rtol=1e-5)

    # --- Test 2: larger K to exercise the multi-K-tile accumulator path,
    # with a nonzero (trained-like) whitening bias.
    K2, N2, B2 = 1536, 256, 16
    bias2 = 0.1 * jax.random.normal(kb2, (K2,), dtype=jnp.float32)
    weight2 = 0.02 * jax.random.normal(kw2, (N2, K2), dtype=jnp.float32)
    weight2_t = jnp.asarray(weight2.T)
    x2 = jax.random.normal(kx2, (B2, K2), dtype=jnp.float32)

    y2 = pw_layer(x2, bias2, weight2_t)
    y2 = jax.block_until_ready(y2)

    y2_ref = jnp.dot(x2 - bias2[None, :], weight2.T)
    assert y2.shape == (B2, N2)
    assert jnp.allclose(y2, y2_ref, atol=1e-4, rtol=1e-4)

    print("KERNEL_OK")
</pallas_src>

<mosaic_0001>
module attributes {stable_mosaic.version = 11 : i64} {
  func.func @pw_kernel_single_k(%arg0: i32, %arg1: i32, %arg2: memref<8x128xf32, #tpu.memory_space<vmem>>, %arg3: memref<1x128xf32, #tpu.memory_space<vmem>>, %arg4: memref<128x128xf32, #tpu.memory_space<vmem>>, %arg5: memref<8x128xf32, #tpu.memory_space<vmem>>) attributes {dimension_semantics = [#tpu.dimension_semantics<parallel>, #tpu.dimension_semantics<parallel>], iteration_bounds = array<i64: 1, 1>, scalar_prefetch = 0 : i64, scratch_operands = 0 : i64, tpu.core_type = #tpu.core_type<tc>, window_params = [{transform_indices = @transform_0, window_bounds = array<i64: 8, 128>}, {pipeline_mode = #tpu.pipeline_mode<synchronous>, transform_indices = @transform_1, window_bounds = array<i64: 1, 128>}, {transform_indices = @transform_2, window_bounds = array<i64: 128, 128>}, {transform_indices = @transform_3, window_bounds = array<i64: 8, 128>}]} {
    %c0 = arith.constant 0 : index
    %c0_0 = arith.constant 0 : index
    %0 = vector.load %arg2[%c0, %c0_0] : memref<8x128xf32, #tpu.memory_space<vmem>>, vector<8x128xf32>
    %c0_1 = arith.constant 0 : index
    %c0_2 = arith.constant 0 : index
    %1 = vector.load %arg3[%c0_1, %c0_2] : memref<1x128xf32, #tpu.memory_space<vmem>>, vector<1x128xf32>
    %2 = vector.broadcast %1 : vector<1x128xf32> to vector<8x128xf32>
    %3 = arith.subf %0, %2 : vector<8x128xf32>
    %c0_3 = arith.constant 0 : index
    %c0_4 = arith.constant 0 : index
    %4 = vector.load %arg4[%c0_3, %c0_4] : memref<128x128xf32, #tpu.memory_space<vmem>>, vector<128x128xf32>
    %cst = arith.constant dense<0.000000e+00> : vector<8x128xf32>
    %5 = tpu.matmul %3, %4, %cst {dimension_numbers = #tpu.dot_dimension_numbers<[1], [0], [0], [1], [0, 0, 1, 1], [], []>} : vector<8x128xf32>, vector<128x128xf32>, vector<8x128xf32> -> vector<8x128xf32>
    %c0_5 = arith.constant 0 : index
    %c0_6 = arith.constant 0 : index
    %6 = vector.load %arg5[%c0_5, %c0_6] : memref<8x128xf32, #tpu.memory_space<vmem>>, vector<8x128xf32>
    tpu.vector_store %arg5[%c0_5, %c0_6], %5 {strides = array<i32>} : memref<8x128xf32, #tpu.memory_space<vmem>>, vector<8x128xf32>,
    return
  }
  func.func @transform_0(%arg0: i32, %arg1: i32) -> (i32, i32) {
    %c0_i32 = arith.constant 0 : i32
    %c0_i32_0 = arith.constant 0 : i32
    return %arg0, %c0_i32 : i32, i32
  }
  func.func @transform_1(%arg0: i32, %arg1: i32) -> (i32, i32) {
    %c0_i32 = arith.constant 0 : i32
    %c0_i32_0 = arith.constant 0 : i32
    %c0_i32_1 = arith.constant 0 : i32
    return %c0_i32, %c0_i32_0 : i32, i32
  }
  func.func @transform_2(%arg0: i32, %arg1: i32) -> (i32, i32) {
    %c0_i32 = arith.constant 0 : i32
    %c0_i32_0 = arith.constant 0 : i32
    return %c0_i32, %arg1 : i32, i32
  }
  func.func @transform_3(%arg0: i32, %arg1: i32) -> (i32, i32) {
    %c0_i32 = arith.constant 0 : i32
    return %arg0, %arg1 : i32, i32
  }
}

</mosaic_0001>

<llo_original>
// kernel: tpu_custom_call.1
$region0: #{tpu_custom_call.1}
  #allocation0 [shape = 'u32[]', space=smem, size = 0x4, offset = 0x4, fixed_abs, tag = 'smem constant byte address 0x4 - core index']
  #allocation1 [shape = 'u32[144,128]{1,0:T(1,128)}', space=vmem, size = 0x12000, scoped, tag = 'internal scratch']
  %s0 = inlined_call_operand.hbm [shape: f32[8,128], index: 0, kind: input, shape index: {}]
  %s1 = inlined_call_operand.vmem [shape: f32[1,128], index: 1, kind: input, shape index: {}]
  %s2 = inlined_call_operand.hbm [shape: f32[128,128], index: 2, kind: input, shape index: {}]
  %s3 = inlined_call_operand.hbm [shape: f32[8,128], index: 3, kind: output, shape index: {}]
  %s4 = sld [smem:[#allocation0]]
  $region30: #{tpu_custom_call.1} parent=0
    _
  %s6 = ssub.s32 1, %s4
  %s7 = scalar_select 0, %s6, %s4
  $region1: #{tpu_custom_call.1} parent=0
    #allocation2 [shape = 'u8[4096]{0}', space=vmem, size = 0x1000, scoped, tag = 'input window, operand 0, single buffered']
    #allocation3 [shape = 's32[1]{0}', space=sflag, size = 0x4, scoped, tag = 'scoped memory for tpu_custom_call.1']
    #allocation4 [shape = 's32[1]{0}', space=sflag, size = 0x4, scoped, tag = 'scoped memory for tpu_custom_call.1']
    #allocation5 [shape = 'u8[65536]{0}', space=vmem, size = 0x10000, scoped, tag = 'input window, operand 2, single buffered']
    #allocation6 [shape = 's32[1]{0}', space=sflag, size = 0x4, scoped, tag = 'scoped memory for tpu_custom_call.1']
    #allocation7 [shape = 'u8[4096]{0}', space=vmem, size = 0x1000, scoped, tag = 'output window, operand 0, single buffered']
    %8 = vsyncpa [#allocation3], 0
    %9 = vsyncpa [#allocation6], 0
    %10 = vsyncpa [#allocation4], 0
    // Predicated region
    $region2: #{tpu_custom_call.1} parent=1 // pred_check
      _
    $region3: #{tpu_custom_call.1} parent=1 // pred_check_branch
      %12 = sbr.rel (0) target = $region5
    $region4: #{tpu_custom_call.1} parent=1 // pred_region
      %s14 = ssub.s32 128, 128
      %15 = vsyncadd [#allocation3], %s14
      %s17 = sshll.u32 [#allocation2], 4
      %s18 = int_to_ptr.vmem [resolvable:$true] %s17
      %20 = dma.hbm_to_vmem [thread:$0]  %s0, 128, %s18, [#allocation3]
    $region5: #{tpu_custom_call.1} parent=1 // pred_fallthru
      _
    // Predicated region
    $region6: #{tpu_custom_call.1} parent=1 // pred_check
      _
    $region7: #{tpu_custom_call.1} parent=1 // pred_check_branch
      %22 = sbr.rel (0) target = $region9
    $region8: #{tpu_custom_call.1} parent=1 // pred_region
      _
    $region9: #{tpu_custom_call.1} parent=1 // pred_fallthru
      _
    // Predicated region
    $region10: #{tpu_custom_call.1} parent=1 // pred_check
      _
    $region11: #{tpu_custom_call.1} parent=1 // pred_check_branch
      %24 = sbr.rel (0) target = $region13
    $region12: #{tpu_custom_call.1} parent=1 // pred_region
      %s26 = ssub.s32 2048, 2048
      %27 = vsyncadd [#allocation6], %s26
      %s28 = sshll.u32 [#allocation5], 4
      %s29 = int_to_ptr.vmem [resolvable:$true] %s28
      %34 = dma.hbm_to_vmem [thread:$0]  %s2, 2048, %s29, [#allocation6], 128, 128, 8
    $region13: #{tpu_custom_call.1} parent=1 // pred_fallthru
      _
    // Predicated region
    $region14: #{tpu_custom_call.1} parent=1 // pred_check
      _
    $region15: #{tpu_custom_call.1} parent=1 // pred_check_branch
      %36 = sbr.rel (0) target = $region17
    $region16: #{tpu_custom_call.1} parent=1 // pred_region
      %37 = dma.done [#allocation3], 128
    $region17: #{tpu_custom_call.1} parent=1 // pred_fallthru
      _
    // Predicated region
    $region18: #{tpu_custom_call.1} parent=1 // pred_check
      _
    $region19: #{tpu_custom_call.1} parent=1 // pred_check_branch
      %39 = sbr.rel (0) target = $region21
    $region20: #{tpu_custom_call.1} parent=1 // pred_region
      %40 = dma.done [#allocation6], 2048
    $region21: #{tpu_custom_call.1} parent=1 // pred_fallthru
      _
    %v41 = vld [vmem:[#allocation2] sm:$0xff]
    %v42 = vld [vmem:[%s1] sm:$0x1]
    %v44 = vlaneseq
    %v45 = vshrl.u32 %v44, 7
    %v46 = vsub.s32 0, %v45
    %v47 = vrot.slane %v42, %v46
    %v49 = vsub.f32 %v41, %v47
    %v50 = vld [vmem:[#allocation5] sm:$0xff]
    %v51 = vld [vmem:[#allocation5 + $0x8] sm:$0xff]
    %v52 = vld [vmem:[#allocation5 + $0x10] sm:$0xff]
    %v53 = vld [vmem:[#allocation5 + $0x18] sm:$0xff]
    %v54 = vld [vmem:[#allocation5 + $0x20] sm:$0xff]
    %v55 = vld [vmem:[#allocation5 + $0x28] sm:$0xff]
    %v56 = vld [vmem:[#allocation5 + $0x30] sm:$0xff]
    %v57 = vld [vmem:[#allocation5 + $0x38] sm:$0xff]
    %v58 = vld [vmem:[#allocation5 + $0x40] sm:$0xff]
    %v59 = vld [vmem:[#allocation5 + $0x48] sm:$0xff]
    %v60 = vld [vmem:[#allocation5 + $0x50] sm:$0xff]
    %v61 = vld [vmem:[#allocation5 + $0x58] sm:$0xff]
    %v62 = vld [vmem:[#allocation5 + $0x60] sm:$0xff]
    %v63 = vld [vmem:[#allocation5 + $0x68] sm:$0xff]
    %v64 = vld [vmem:[#allocation5 + $0x70] sm:$0xff]
    %v65 = vld [vmem:[#allocation5 + $0x78] sm:$0xff]
    %66 = vmatprep.subr.mxu0 0.0
    %67 = vmatpush1.msra.mxu0 %v50
    %68 = vmatprep.subr.mxu0 0.0
    %69 = vmatpush1.msra.mxu0 %v51
    %70 = vmatprep.subr.mxu0 0.0
    %71 = vmatpush1.msra.mxu0 %v52
    %72 = vmatprep.subr.mxu0 0.0
    %73 = vmatpush1.msra.mxu0 %v53
    %74 = vmatprep.subr.mxu0 0.0
    %75 = vmatpush1.msra.mxu0 %v54
    %76 = vmatprep.subr.mxu0 0.0
    %77 = vmatpush1.msra.mxu0 %v55
    %78 = vmatprep.subr.mxu0 0.0
    %79 = vmatpush1.msra.mxu0 %v56
    %80 = vmatprep.subr.mxu0 0.0
    %81 = vmatpush1.msra.mxu0 %v57
    %82 = vmatprep.subr.mxu0 0.0
    %83 = vmatpush1.msra.mxu0 %v58
    %84 = vmatprep.subr.mxu0 0.0
    %85 = vmatpush1.msra.mxu0 %v59
    %86 = vmatprep.subr.mxu0 0.0
    %87 = vmatpush1.msra.mxu0 %v60
    %88 = vmatprep.subr.mxu0 0.0
    %89 = vmatpush1.msra.mxu0 %v61
    %90 = vmatprep.subr.mxu0 0.0
    %91 = vmatpush1.msra.mxu0 %v62
    %92 = vmatprep.subr.mxu0 0.0
    %93 = vmatpush1.msra.mxu0 %v63
    %94 = vmatprep.subr.mxu0 0.0
    %95 = vmatpush1.msra.mxu0 %v64
    %96 = vmatprep.subr.mxu0 0.0
    %97 = vmatpush1.msra.mxu0 %v65
    %98 = vmatprep.subr.mxu0 0.0
    %99 = vmatpush1.msra.mxu0 0.0
    %100 = vmatprep.subr.mxu0 0.0
    %101 = vmatpush1.msra.mxu0 0.0
    %102 = vmatprep.subr.mxu0 0.0
    %103 = vmatpush1.msra.mxu0 0.0
    %104 = vmatprep.subr.mxu0 0.0
    %105 = vmatpush1.msra.mxu0 0.0
    %106 = vmatprep.subr.mxu0 0.0
    %107 = vmatpush1.msra.mxu0 0.0
    %108 = vmatprep.subr.mxu0 0.0
    %109 = vmatpush1.msra.mxu0 0.0
    %110 = vmatprep.subr.mxu0 0.0
    %111 = vmatpush1.msra.mxu0 0.0
    %112 = vmatprep.subr.mxu0 0.0
    %113 = vmatpush1.msra.mxu0 0.0
    %114 = vmatprep.subr.mxu0 0.0
    %115 = vmatpush1.msra.mxu0 0.0
    %116 = vmatprep.subr.mxu0 0.0
    %117 = vmatpush1.msra.mxu0 0.0
    %118 = vmatprep.subr.mxu0 0.0
    %119 = vmatpush1.msra.mxu0 0.0
    %120 = vmatprep.subr.mxu0 0.0
    %121 = vmatpush1.msra.mxu0 0.0
    %122 = vmatprep.subr.mxu0 0.0
    %123 = vmatpush1.msra.mxu0 0.0
    %124 = vmatprep.subr.mxu0 0.0
    %125 = vmatpush1.msra.mxu0 0.0
    %126 = vmatprep.subr.mxu0 0.0
    %127 = vmatpush1.msra.mxu0 0.0
    %128 = vmatprep.subr.mxu0 0.0
    %129 = vmatpush1.msra.mxu0 0.0
    %130 = vmatprep.mubr.f32.mxu0 0.0
    %131 = vmatmul.mubr.f32.gmra.mrb[0].mxu0 %v49
    %v132 = vpop.f32.mrb[0].mxu0
    %v133 = vadd.f32 0.0, %v132
    %v134 = vpop.f32.mrb[0].mxu0
    %135 = vdwg.mxu0
    %136 = vst [vmem:[#allocation7] sm:$0xff] %v133
    // Predicated region
    $region22: #{tpu_custom_call.1} parent=1 // pred_check
      _
    $region23: #{tpu_custom_call.1} parent=1 // pred_check_branch
      %138 = sbr.rel (0) target = $region25
    $region24: #{tpu_custom_call.1} parent=1 // pred_region
      %s140 = ssub.s32 128, 128
      %141 = vsyncadd [#allocation4], %s140
      %s143 = sshll.u32 [#allocation7], 4
      %s144 = int_to_ptr.vmem [resolvable:$true] %s143
      %146 = dma.vmem_to_hbm [thread:$0]  %s144, 128, %s3, [#allocation4]
    $region25: #{tpu_custom_call.1} parent=1 // pred_fallthru
      _
    // Predicated region
    $region26: #{tpu_custom_call.1} parent=1 // pred_check
      _
    $region27: #{tpu_custom_call.1} parent=1 // pred_check_branch
      %148 = sbr.rel (0) target = $region29
    $region28: #{tpu_custom_call.1} parent=1 // pred_region
      %149 = dma.done [#allocation4], 128
    $region29: #{tpu_custom_call.1} parent=1 // pred_fallthru
      _
    %150 = vsyncpa [#allocation3], 1
    %151 = vsyncpa [#allocation6], 1
    %152 = vsyncpa [#allocation4], 1

</llo_original>
